<compile_context>
chip_gen: v6e
topology: v6e:2x2x1
jax: 0.10.0
libtpu: 0.0.40
codegen_flags: <defaults>
</compile_context>

<pallas_src>
import functools

import jax
import jax.numpy as jnp
from jax import lax
from jax.experimental import pallas as pl
from jax.experimental.pallas import tpu as pltpu

_LANE = 128
_SUBLANE = 8


def _round_up(n, m):
    return ((n + m - 1) // m) * m


def _feat_pad(n):
    # Large feature dims: pad to 256 (full-width pass on the 2x256^2 MXU of v6e/v7x).
    # Small ones: keep 128 (lane width) so we don't double the zero FLOPs.
    return _round_up(n, 256 if n >= 1024 else _LANE)


def _pad_to(a, target_shape):
    pads = tuple((0, t - s) for s, t in zip(a.shape, target_shape))
    if all(p == (0, 0) for p in pads):
        return a
    return jnp.pad(a, pads)


def _vmem_capacity():
    try:
        return int(pltpu.get_tpu_info().vmem_capacity_bytes)   # 128 MiB v5e/v6e, 64 MiB v7x
    except Exception:
        return 64 * 1024 * 1024                                # conservative default


# --------------------------------------------------------------------------------------
# Kernels
# --------------------------------------------------------------------------------------

def mlp_resident_kernel(x_ref, wh_ref, bh_ref, wo_ref, bo_ref, o_ref, *, n_hidden):
    """All weights VMEM-resident.  Grid: (batch tiles,).

    x_ref : (TB, IN_P) bf16     wh_ref: (NH, IN_P, IN_P) bf16   bh_ref: (NH, 1, IN_P) f32
    wo_ref: (IN_P, OUT_P) bf16  bo_ref: (1, OUT_P) f32          o_ref : (TB, OUT_P) f32
    """
    x = x_ref[...]

    def layer(l, h):
        y = jnp.dot(h, wh_ref[l], preferred_element_type=jnp.float32)   # MXU, f32 acc
        y = jnp.maximum(y + bh_ref[l], 0.0)                             # bias + ReLU (f32)
        # Dropout(p): eval-mode identity.
        return y.astype(h.dtype)                                        # bf16 for next MXU pass

    # Full unroll for shallow nets; partial unroll keeps scheduler visibility for deep ones.
    h = lax.fori_loop(0, n_hidden, layer, x, unroll=(n_hidden if n_hidden <= 8 else 2))
    out = jnp.dot(h, wo_ref[...], preferred_element_type=jnp.float32) + bo_ref[...]
    o_ref[...] = out.astype(o_ref.dtype)


def mlp_streamed_kernel(x_ref, wh_ref, bh_ref, wo_ref, bo_ref, o_ref, h_scratch):
    """Layer-streamed.  Grid: (batch tiles, NH) with the layer axis innermost/"arbitrary".

    Hidden weights arrive one layer at a time ((1, IN_P, IN_P)); the activation tile is
    carried across layer steps in h_scratch; the output is produced on the last layer
    step (fused with the final Linear).
    """
    l = pl.program_id(1)
    nh = pl.num_programs(1)

    @pl.when(l == 0)
    def _():
        h_scratch[...] = x_ref[...]

    y = jnp.dot(h_scratch[...], wh_ref[0], preferred_element_type=jnp.float32)
    y = jnp.maximum(y + bh_ref[0], 0.0)
    # Dropout(p): eval-mode identity.
    h_scratch[...] = y.astype(h_scratch.dtype)

    @pl.when(l == nh - 1)
    def _():
        out = jnp.dot(h_scratch[...], wo_ref[...],
                      preferred_element_type=jnp.float32) + bo_ref[...]
        o_ref[...] = out.astype(o_ref.dtype)


def linear_kernel(x_ref, wo_ref, bo_ref, o_ref):
    """nlayers == 1: a single Linear (avoids zero-extent hidden-weight blocks)."""
    out = jnp.dot(x_ref[...], wo_ref[...], preferred_element_type=jnp.float32) + bo_ref[...]
    o_ref[...] = out.astype(o_ref.dtype)


# --------------------------------------------------------------------------------------
# pallas_call builder (cached per shape) + wrapper
# --------------------------------------------------------------------------------------

@functools.lru_cache(maxsize=128)
def _build_call(B_P, IN_P, OUT_P, NH, tile_b, streaming):
    grid_b = B_P // tile_b
    phys = _vmem_capacity()
    act_dtype = jnp.bfloat16

    out_shape = jax.ShapeDtypeStruct((B_P, OUT_P), jnp.float32)
    act_bytes = 2 * tile_b * (IN_P * 2 + OUT_P * 4)          # double-buffered in/out tiles

    flops = 2 * B_P * IN_P * IN_P * NH + 2 * B_P * IN_P * OUT_P
    w_bytes = NH * IN_P * IN_P * 2 + NH * IN_P * 4 + IN_P * OUT_P * 2 + OUT_P * 4
    cost = pl.CostEstimate(flops=int(flops), transcendentals=0,
                           bytes_accessed=int(B_P * IN_P * 2 + w_bytes + B_P * OUT_P * 4))

    def vmem_limit(need):
        return int(min(max(need, 32 * 1024 * 1024), int(phys * 0.9)))

    if NH == 0:
        kernel = linear_kernel
        in_specs = [pl.BlockSpec((tile_b, IN_P), lambda i: (i, 0)),
                    pl.BlockSpec((IN_P, OUT_P), lambda i: (0, 0)),
                    pl.BlockSpec((1, OUT_P), lambda i: (0, 0))]
        out_spec = pl.BlockSpec((tile_b, OUT_P), lambda i: (i, 0))
        grid = (grid_b,)
        scratch = []
        semantics = ("parallel",)
        need = 2 * (IN_P * OUT_P * 2 + OUT_P * 4) + act_bytes + (4 << 20)
    elif not streaming:
        kernel = functools.partial(mlp_resident_kernel, n_hidden=NH)
        in_specs = [pl.BlockSpec((tile_b, IN_P), lambda i: (i, 0)),
                    pl.BlockSpec((NH, IN_P, IN_P), lambda i: (0, 0, 0)),
                    pl.BlockSpec((NH, 1, IN_P), lambda i: (0, 0, 0)),
                    pl.BlockSpec((IN_P, OUT_P), lambda i: (0, 0)),
                    pl.BlockSpec((1, OUT_P), lambda i: (0, 0))]
        out_spec = pl.BlockSpec((tile_b, OUT_P), lambda i: (i, 0))
        grid = (grid_b,)
        scratch = []
        semantics = ("parallel",)
        need = 2 * w_bytes + act_bytes + (4 << 20)            # weights may be double-buffered
    else:
        kernel = mlp_streamed_kernel
        in_specs = [pl.BlockSpec((tile_b, IN_P), lambda i, l: (i, 0)),
                    pl.BlockSpec((1, IN_P, IN_P), lambda i, l: (l, 0, 0)),      # stream per layer
                    pl.BlockSpec((1, 1, IN_P), lambda i, l: (l, 0, 0)),
                    pl.BlockSpec((IN_P, OUT_P), lambda i, l: (0, 0)),
                    pl.BlockSpec((1, OUT_P), lambda i, l: (0, 0))]
        out_spec = pl.BlockSpec((tile_b, OUT_P), lambda i, l: (i, 0))
        grid = (grid_b, NH)
        scratch = [pltpu.VMEM((tile_b, IN_P), act_dtype)]     # activation carry across layers
        semantics = ("parallel", "arbitrary")
        need = (2 * (IN_P * IN_P * 2 + IN_P * 4)              # 2 buffered hidden layers
                + 2 * (IN_P * OUT_P * 2 + OUT_P * 4)
                + act_bytes + tile_b * IN_P * 2 + (4 << 20))

    return pl.pallas_call(
        kernel,
        out_shape=out_shape,
        grid_spec=pltpu.PrefetchScalarGridSpec(
            num_scalar_prefetch=0,
            grid=grid,
            in_specs=in_specs,
            out_specs=out_spec,
            scratch_shapes=scratch,
        ),
        compiler_params=pltpu.CompilerParams(
            dimension_semantics=semantics,
            vmem_limit_bytes=vmem_limit(need),
        ),
        cost_estimate=cost,
    )


def mlp_forward(x, hidden_w, hidden_b, final_w, final_b, *, tile_b=None, force_streaming=False):
    """x: (B, IN). hidden_w: (NH, IN, IN) bf16, hidden_b: (NH, 1, IN) f32,
    final_w: (IN, OUT) bf16, final_b: (1, OUT) f32.  Returns (B, OUT) float32."""
    B, IN = x.shape
    OUT = final_w.shape[-1]
    NH = int(hidden_w.shape[0])

    IN_P = _feat_pad(IN)
    OUT_P = _feat_pad(OUT)
    phys = _vmem_capacity()

    # ---- Batch tiling: one big tile (grid is a serial loop on 1-TC chips). ----
    B8 = _round_up(B, _SUBLANE)
    if tile_b is None:
        tile_b = min(512, B8)
        # Keep the activation double-buffers a modest fraction of VMEM next to the weights.
        while tile_b > 64 and 2 * tile_b * (IN_P * 2 + OUT_P * 4) > phys // 4:
            tile_b //= 2
    tile_b = max(_SUBLANE, _round_up(min(tile_b, B8), _SUBLANE))
    B_P = _round_up(B8, tile_b)

    # ---- Static resident-vs-streamed decision (no exception-driven fallback). ----
    weight_bytes = (NH * IN_P * IN_P * 2 + NH * IN_P * 4 + IN_P * OUT_P * 2 + OUT_P * 4)
    act_bytes = 2 * tile_b * (IN_P * 2 + OUT_P * 4)
    streaming = bool(force_streaming) or (NH > 0 and 2 * weight_bytes + act_bytes > int(phys * 0.6))

    # ---- Pad + cast once in the wrapper (guarantees bf16 x bf16 MXU fast path). ----
    xp = _pad_to(x.astype(jnp.bfloat16), (B_P, IN_P))
    wop = _pad_to(final_w.astype(jnp.bfloat16), (IN_P, OUT_P))
    bop = _pad_to(final_b.astype(jnp.float32), (1, OUT_P))

    call = _build_call(B_P, IN_P, OUT_P, NH, tile_b, streaming)
    if NH > 0:
        whp = _pad_to(hidden_w.astype(jnp.bfloat16), (NH, IN_P, IN_P))
        bhp = _pad_to(hidden_b.astype(jnp.float32), (NH, 1, IN_P))
        out_p = call(xp, whp, bhp, wop, bop)
    else:
        out_p = call(xp, wop, bop)

    return out_p[:B, :OUT]


# --------------------------------------------------------------------------------------
# Params / reference
# --------------------------------------------------------------------------------------

def init_mlp_params(key, in_features, out_features, nlayers, param_dtype=jnp.bfloat16):
    """Mirror nn.Linear default init U(-1/sqrt(fan_in), 1/sqrt(fan_in)); weights stored
    transposed (fan_in, fan_out), cast to bf16; biases kept f32 (added in f32 in-kernel)."""
    n_hidden = nlayers - 1
    keys = jax.random.split(key, 2 * max(n_hidden, 1) + 2)
    bound = 1.0 / (in_features ** 0.5)
    hw, hb = [], []
    for l in range(n_hidden):
        hw.append(jax.random.uniform(keys[2 * l], (in_features, in_features),
                                     jnp.float32, -bound, bound))
        hb.append(jax.random.uniform(keys[2 * l + 1], (1, in_features),
                                     jnp.float32, -bound, bound))
    if n_hidden > 0:
        hidden_w = jnp.stack(hw, axis=0).astype(param_dtype)
        hidden_b = jnp.stack(hb, axis=0)
    else:
        hidden_w = jnp.zeros((0, in_features, in_features), param_dtype)
        hidden_b = jnp.zeros((0, 1, in_features), jnp.float32)
    final_w = jax.random.uniform(keys[-2], (in_features, out_features),
                                 jnp.float32, -bound, bound).astype(param_dtype)
    final_b = jax.random.uniform(keys[-1], (1, out_features),
                                 jnp.float32, -bound, bound)
    return hidden_w, hidden_b, final_w, final_b


def mlp_reference(x, hidden_w, hidden_b, final_w, final_b):
    """Pure-JAX reference mirroring the kernel numerics (bf16 storage, f32 accumulate)."""
    f32 = jnp.float32
    h = x.astype(jnp.bfloat16)
    for l in range(hidden_w.shape[0]):
        y = jnp.dot(h.astype(f32), hidden_w[l].astype(f32),
                    precision=jax.lax.Precision.HIGHEST) + hidden_b[l].astype(f32)
        h = jnp.maximum(y, 0.0).astype(jnp.bfloat16)
    return jnp.dot(h.astype(f32), final_w.astype(f32),
                   precision=jax.lax.Precision.HIGHEST) + final_b.astype(f32)


if __name__ == "__main__":
    # Shapes consistent with the module: MLP(in_features=32, out_features=16, nlayers=3)
    B, IN, OUT, NLAYERS = 16, 32, 16, 3

    key = jax.random.PRNGKey(0)
    k_x, k_p = jax.random.split(key)
    x = jax.random.normal(k_x, (B, IN), jnp.float32)

    hidden_w, hidden_b, final_w, final_b = init_mlp_params(k_p, IN, OUT, NLAYERS)
    ref = mlp_reference(x, hidden_w, hidden_b, final_w, final_b)

    # Default path (resident weights for this tiny config).
    out = jax.block_until_ready(mlp_forward(x, hidden_w, hidden_b, final_w, final_b))
    assert out.shape == (B, OUT)
    assert jnp.allclose(out, ref, atol=5e-3, rtol=5e-3), "resident path mismatch vs reference"

    # Also exercise the layer-streaming path (selected automatically for large NH * IN^2).
    out_s = jax.block_until_ready(
        mlp_forward(x, hidden_w, hidden_b, final_w, final_b, force_streaming=True))
    assert jnp.allclose(out_s, ref, atol=5e-3, rtol=5e-3), "streamed path mismatch vs reference"

    print("KERNEL_OK")
</pallas_src>

<mosaic_0001>
module attributes {stable_mosaic.version = 11 : i64} {
  func.func @mlp_resident_kernel(%arg0: i32, %arg1: memref<16x128xbf16, #tpu.memory_space<vmem>>, %arg2: memref<2x128x128xbf16, #tpu.memory_space<vmem>>, %arg3: memref<2x1x128xf32, #tpu.memory_space<vmem>>, %arg4: memref<128x128xbf16, #tpu.memory_space<vmem>>, %arg5: memref<1x128xf32, #tpu.memory_space<vmem>>, %arg6: memref<16x128xf32, #tpu.memory_space<vmem>>) attributes {dimension_semantics = [#tpu.dimension_semantics<parallel>], iteration_bounds = array<i64: 1>, scalar_prefetch = 0 : i64, scratch_operands = 0 : i64, tpu.core_type = #tpu.core_type<tc>, window_params = [{transform_indices = @transform_0, window_bounds = array<i64: 16, 128>}, {pipeline_mode = #tpu.pipeline_mode<synchronous>, transform_indices = @transform_1, window_bounds = array<i64: 2, 128, 128>}, {pipeline_mode = #tpu.pipeline_mode<synchronous>, transform_indices = @transform_2, window_bounds = array<i64: 2, 1, 128>}, {pipeline_mode = #tpu.pipeline_mode<synchronous>, transform_indices = @transform_3, window_bounds = array<i64: 128, 128>}, {pipeline_mode = #tpu.pipeline_mode<synchronous>, transform_indices = @transform_4, window_bounds = array<i64: 1, 128>}, {transform_indices = @transform_5, window_bounds = array<i64: 16, 128>}]} {
    %c0 = arith.constant 0 : index
    %c0_0 = arith.constant 0 : index
    %0 = vector.load %arg1[%c0, %c0_0] : memref<16x128xbf16, #tpu.memory_space<vmem>>, vector<16x128xbf16>
    %c0_i32 = arith.constant 0 : i32
    %1 = arith.index_cast %c0_i32 : i32 to index
    %c0_1 = arith.constant 0 : index
    %c0_2 = arith.constant 0 : index
    %2 = vector.load %arg2[%1, %c0_1, %c0_2] : memref<2x128x128xbf16, #tpu.memory_space<vmem>>, vector<1x128x128xbf16>
    %3 = vector.shape_cast %2 : vector<1x128x128xbf16> to vector<128x128xbf16>
    %cst = arith.constant dense<0.000000e+00> : vector<16x128xf32>
    %4 = tpu.matmul %0, %3, %cst {dimension_numbers = #tpu.dot_dimension_numbers<[1], [0], [0], [1], [0, 0, 1, 1], [], []>} : vector<16x128xbf16>, vector<128x128xbf16>, vector<16x128xf32> -> vector<16x128xf32>
    %5 = arith.index_cast %c0_i32 : i32 to index
    %c0_3 = arith.constant 0 : index
    %c0_4 = arith.constant 0 : index
    %6 = vector.load %arg3[%5, %c0_3, %c0_4] : memref<2x1x128xf32, #tpu.memory_space<vmem>>, vector<1x1x128xf32>
    %7 = vector.shape_cast %6 : vector<1x1x128xf32> to vector<1x128xf32>
    %8 = vector.broadcast %7 : vector<1x128xf32> to vector<16x128xf32>
    %9 = arith.addf %4, %8 : vector<16x128xf32>
    %cst_5 = arith.constant 0.000000e+00 : f32
    %10 = vector.broadcast %cst_5 : f32 to vector<16x128xf32>
    %11 = arith.maximumf %9, %10 : vector<16x128xf32>
    %12 = arith.truncf %11 : vector<16x128xf32> to vector<16x128xbf16>
    %c1_i32 = arith.constant 1 : i32
    %13 = arith.index_cast %c1_i32 : i32 to index
    %c0_6 = arith.constant 0 : index
    %c0_7 = arith.constant 0 : index
    %14 = vector.load %arg2[%13, %c0_6, %c0_7] : memref<2x128x128xbf16, #tpu.memory_space<vmem>>, vector<1x128x128xbf16>
    %15 = vector.shape_cast %14 : vector<1x128x128xbf16> to vector<128x128xbf16>
    %cst_8 = arith.constant dense<0.000000e+00> : vector<16x128xf32>
    %16 = tpu.matmul %12, %15, %cst_8 {dimension_numbers = #tpu.dot_dimension_numbers<[1], [0], [0], [1], [0, 0, 1, 1], [], []>} : vector<16x128xbf16>, vector<128x128xbf16>, vector<16x128xf32> -> vector<16x128xf32>
    %17 = arith.index_cast %c1_i32 : i32 to index
    %c0_9 = arith.constant 0 : index
    %c0_10 = arith.constant 0 : index
    %18 = vector.load %arg3[%17, %c0_9, %c0_10] : memref<2x1x128xf32, #tpu.memory_space<vmem>>, vector<1x1x128xf32>
    %19 = vector.shape_cast %18 : vector<1x1x128xf32> to vector<1x128xf32>
    %20 = vector.broadcast %19 : vector<1x128xf32> to vector<16x128xf32>
    %21 = arith.addf %16, %20 : vector<16x128xf32>
    %cst_11 = arith.constant 0.000000e+00 : f32
    %22 = vector.broadcast %cst_11 : f32 to vector<16x128xf32>
    %23 = arith.maximumf %21, %22 : vector<16x128xf32>
    %24 = arith.truncf %23 : vector<16x128xf32> to vector<16x128xbf16>
    %c2_i32 = arith.constant 2 : i32
    %c0_12 = arith.constant 0 : index
    %c0_13 = arith.constant 0 : index
    %25 = vector.load %arg4[%c0_12, %c0_13] : memref<128x128xbf16, #tpu.memory_space<vmem>>, vector<128x128xbf16>
    %cst_14 = arith.constant dense<0.000000e+00> : vector<16x128xf32>
    %26 = tpu.matmul %24, %25, %cst_14 {dimension_numbers = #tpu.dot_dimension_numbers<[1], [0], [0], [1], [0, 0, 1, 1], [], []>} : vector<16x128xbf16>, vector<128x128xbf16>, vector<16x128xf32> -> vector<16x128xf32>
    %c0_15 = arith.constant 0 : index
    %c0_16 = arith.constant 0 : index
    %27 = vector.load %arg5[%c0_15, %c0_16] : memref<1x128xf32, #tpu.memory_space<vmem>>, vector<1x128xf32>
    %28 = vector.broadcast %27 : vector<1x128xf32> to vector<16x128xf32>
    %29 = arith.addf %26, %28 : vector<16x128xf32>
    %c0_17 = arith.constant 0 : index
    %c0_18 = arith.constant 0 : index
    %30 = vector.load %arg6[%c0_17, %c0_18] : memref<16x128xf32, #tpu.memory_space<vmem>>, vector<16x128xf32>
    tpu.vector_store %arg6[%c0_17, %c0_18], %29 {strides = array<i32>} : memref<16x128xf32, #tpu.memory_space<vmem>>, vector<16x128xf32>,
    return
  }
  func.func @transform_0(%arg0: i32) -> (i32, i32) {
    %c0_i32 = arith.constant 0 : i32
    %c0_i32_0 = arith.constant 0 : i32
    return %arg0, %c0_i32 : i32, i32
  }
  func.func @transform_1(%arg0: i32) -> (i32, i32, i32) {
    %c0_i32 = arith.constant 0 : i32
    %c0_i32_0 = arith.constant 0 : i32
    %c0_i32_1 = arith.constant 0 : i32
    %c0_i32_2 = arith.constant 0 : i32
    return %c0_i32, %c0_i32_0, %c0_i32_1 : i32, i32, i32
  }
  func.func @transform_2(%arg0: i32) -> (i32, i32, i32) {
    %c0_i32 = arith.constant 0 : i32
    %c0_i32_0 = arith.constant 0 : i32
    %c0_i32_1 = arith.constant 0 : i32
    %c0_i32_2 = arith.constant 0 : i32
    return %c0_i32, %c0_i32_0, %c0_i32_1 : i32, i32, i32
  }
  func.func @transform_3(%arg0: i32) -> (i32, i32) {
    %c0_i32 = arith.constant 0 : i32
    %c0_i32_0 = arith.constant 0 : i32
    %c0_i32_1 = arith.constant 0 : i32
    return %c0_i32, %c0_i32_0 : i32, i32
  }
  func.func @transform_4(%arg0: i32) -> (i32, i32) {
    %c0_i32 = arith.constant 0 : i32
    %c0_i32_0 = arith.constant 0 : i32
    %c0_i32_1 = arith.constant 0 : i32
    return %c0_i32, %c0_i32_0 : i32, i32
  }
  func.func @transform_5(%arg0: i32) -> (i32, i32) {
    %c0_i32 = arith.constant 0 : i32
    %c0_i32_0 = arith.constant 0 : i32
    return %arg0, %c0_i32 : i32, i32
  }
}

</mosaic_0001>

<llo_original>
// kernel: tpu_custom_call.1
$region0: #{tpu_custom_call.1}
  #allocation0 [shape = 'u32[]', space=smem, size = 0x4, offset = 0x4, fixed_abs, tag = 'smem constant byte address 0x4 - core index']
  #allocation1 [shape = 'u32[144,128]{1,0:T(1,128)}', space=vmem, size = 0x12000, scoped, tag = 'internal scratch']
  %s0 = inlined_call_operand.hbm [shape: bf16[16,128], index: 0, kind: input, shape index: {}]
  %s1 = inlined_call_operand.hbm [shape: bf16[2,128,128], index: 1, kind: input, shape index: {}]
  %s2 = inlined_call_operand.vmem [shape: f32[2,1,128], index: 2, kind: input, shape index: {}]
  %s3 = inlined_call_operand.hbm [shape: bf16[128,128], index: 3, kind: input, shape index: {}]
  %s4 = inlined_call_operand.vmem [shape: f32[1,128], index: 4, kind: input, shape index: {}]
  %s5 = inlined_call_operand.hbm [shape: f32[16,128], index: 5, kind: output, shape index: {}]
  %s6 = sld [smem:[#allocation0]]
  $region42: #{tpu_custom_call.1} parent=0
    _
  %s8 = ssub.s32 1, %s6
  %s9 = scalar_select 0, %s8, %s6
  $region1: #{tpu_custom_call.1} parent=0
    #allocation2 [shape = 'u8[4096]{0}', space=vmem, size = 0x1000, scoped, tag = 'input window, operand 0, single buffered']
    #allocation3 [shape = 's32[1]{0}', space=sflag, size = 0x4, scoped, tag = 'scoped memory for tpu_custom_call.1']
    #allocation4 [shape = 's32[1]{0}', space=sflag, size = 0x4, scoped, tag = 'scoped memory for tpu_custom_call.1']
    #allocation5 [shape = 'u8[65536]{0}', space=vmem, size = 0x10000, scoped, tag = 'input window, operand 1, single buffered']
    #allocation6 [shape = 's32[1]{0}', space=sflag, size = 0x4, scoped, tag = 'scoped memory for tpu_custom_call.1']
    #allocation7 [shape = 'u8[32768]{0}', space=vmem, size = 0x8000, scoped, tag = 'input window, operand 3, single buffered']
    #allocation8 [shape = 'u8[8192]{0}', space=vmem, size = 0x2000, scoped, tag = 'output window, operand 0, single buffered']
    %10 = vsyncpa [#allocation3], 0
    %11 = vsyncpa [#allocation6], 0
    %12 = vsyncpa [#allocation4], 0
    // Predicated region
    $region2: #{tpu_custom_call.1} parent=1 // pred_check
      _
    $region3: #{tpu_custom_call.1} parent=1 // pred_check_branch
      %14 = sbr.rel (0) target = $region5
    $region4: #{tpu_custom_call.1} parent=1 // pred_region
      %s16 = ssub.s32 128, 128
      %17 = vsyncadd [#allocation3], %s16
      %s18 = sshll.u32 [#allocation2], 4
      %s19 = int_to_ptr.vmem [resolvable:$true] %s18
      %24 = dma.hbm_to_vmem [thread:$0]  %s0, 128, %s19, [#allocation3], 64, 64, 4
    $region5: #{tpu_custom_call.1} parent=1 // pred_fallthru
      _
    // Predicated region
    $region6: #{tpu_custom_call.1} parent=1 // pred_check
      _
    $region7: #{tpu_custom_call.1} parent=1 // pred_check_branch
      %26 = sbr.rel (0) target = $region9
    $region8: #{tpu_custom_call.1} parent=1 // pred_region
      %s28 = ssub.s32 2048, 2048
      %29 = vsyncadd [#allocation6], %s28
      %s30 = sshll.u32 [#allocation5], 4
      %s31 = int_to_ptr.vmem [resolvable:$true] %s30
      %36 = dma.hbm_to_vmem [thread:$0]  %s1, 2048, %s31, [#allocation6], 64, 64, 4
    $region9: #{tpu_custom_call.1} parent=1 // pred_fallthru
      _
    // Predicated region
    $region10: #{tpu_custom_call.1} parent=1 // pred_check
      _
    $region11: #{tpu_custom_call.1} parent=1 // pred_check_branch
      %38 = sbr.rel (0) target = $region13
    $region12: #{tpu_custom_call.1} parent=1 // pred_region
      _
    $region13: #{tpu_custom_call.1} parent=1 // pred_fallthru
      _
    // Predicated region
    $region14: #{tpu_custom_call.1} parent=1 // pred_check
      _
    $region15: #{tpu_custom_call.1} parent=1 // pred_check_branch
      %40 = sbr.rel (0) target = $region17
    $region16: #{tpu_custom_call.1} parent=1 // pred_region
      %s42 = ssub.s32 1024, 1024
      %43 = vsyncadd [#allocation6], %s42
      %s44 = sshll.u32 [#allocation7], 4
      %s45 = int_to_ptr.vmem [resolvable:$true] %s44
      %50 = dma.hbm_to_vmem [thread:$0]  %s3, 1024, %s45, [#allocation6], 64, 64, 4
    $region17: #{tpu_custom_call.1} parent=1 // pred_fallthru
      _
    // Predicated region
    $region18: #{tpu_custom_call.1} parent=1 // pred_check
      _
    $region19: #{tpu_custom_call.1} parent=1 // pred_check_branch
      %52 = sbr.rel (0) target = $region21
    $region20: #{tpu_custom_call.1} parent=1 // pred_region
      _
    $region21: #{tpu_custom_call.1} parent=1 // pred_fallthru
      _
    // Predicated region
    $region22: #{tpu_custom_call.1} parent=1 // pred_check
      _
    $region23: #{tpu_custom_call.1} parent=1 // pred_check_branch
      %54 = sbr.rel (0) target = $region25
    $region24: #{tpu_custom_call.1} parent=1 // pred_region
      %55 = dma.done [#allocation3], 128
    $region25: #{tpu_custom_call.1} parent=1 // pred_fallthru
      _
    // Predicated region
    $region26: #{tpu_custom_call.1} parent=1 // pred_check
      _
    $region27: #{tpu_custom_call.1} parent=1 // pred_check_branch
      %57 = sbr.rel (0) target = $region29
    $region28: #{tpu_custom_call.1} parent=1 // pred_region
      %58 = dma.done [#allocation6], 2048
    $region29: #{tpu_custom_call.1} parent=1 // pred_fallthru
      _
    // Predicated region
    $region30: #{tpu_custom_call.1} parent=1 // pred_check
      _
    $region31: #{tpu_custom_call.1} parent=1 // pred_check_branch
      %60 = sbr.rel (0) target = $region33
    $region32: #{tpu_custom_call.1} parent=1 // pred_region
      %61 = dma.done [#allocation6], 1024
    $region33: #{tpu_custom_call.1} parent=1 // pred_fallthru
      _
    %v63 = vld [vmem:[#allocation2] sm:$0xf]
    %v64 = vld [vmem:[#allocation2 + $0x4] sm:$0xf]
    %v65 = vld [vmem:[#allocation5] sm:$0xf]
    %v66 = vld [vmem:[#allocation5 + $0x4] sm:$0xf]
    %v67 = vld [vmem:[#allocation5 + $0x8] sm:$0xf]
    %v68 = vld [vmem:[#allocation5 + $0xc] sm:$0xf]
    %v69 = vld [vmem:[#allocation5 + $0x10] sm:$0xf]
    %v70 = vld [vmem:[#allocation5 + $0x14] sm:$0xf]
    %v71 = vld [vmem:[#allocation5 + $0x18] sm:$0xf]
    %v72 = vld [vmem:[#allocation5 + $0x1c] sm:$0xf]
    %v73 = vld [vmem:[#allocation5 + $0x20] sm:$0xf]
    %v74 = vld [vmem:[#allocation5 + $0x24] sm:$0xf]
    %v75 = vld [vmem:[#allocation5 + $0x28] sm:$0xf]
    %v76 = vld [vmem:[#allocation5 + $0x2c] sm:$0xf]
    %v77 = vld [vmem:[#allocation5 + $0x30] sm:$0xf]
    %v78 = vld [vmem:[#allocation5 + $0x34] sm:$0xf]
    %v79 = vld [vmem:[#allocation5 + $0x38] sm:$0xf]
    %v80 = vld [vmem:[#allocation5 + $0x3c] sm:$0xf]
    %v81 = vld [vmem:[%s2] sm:$0x1]
    %v83 = vlaneseq
    %v84 = vshrl.u32 %v83, 7
    %v85 = vsub.s32 0, %v84
    %v86 = vrot.slane %v81, %v85
    %v90 = vunpack.c.l.b16 %v63
    %v91 = vunpack.c.l.b16 %v64
    %v92 = vpack.c.b16 %v91, %v90
    %v110 = vunpack.c.l.b16 %v65
    %v111 = vunpack.c.l.b16 %v66
    %v112 = vunpack.c.l.b16 %v67
    %v113 = vunpack.c.l.b16 %v68
    %v114 = vunpack.c.l.b16 %v69
    %v115 = vunpack.c.l.b16 %v70
    %v116 = vunpack.c.l.b16 %v71
    %v117 = vunpack.c.l.b16 %v72
    %v118 = vunpack.c.l.b16 %v73
    %v119 = vunpack.c.l.b16 %v74
    %v120 = vunpack.c.l.b16 %v75
    %v121 = vunpack.c.l.b16 %v76
    %v122 = vunpack.c.l.b16 %v77
    %v123 = vunpack.c.l.b16 %v78
    %v124 = vunpack.c.l.b16 %v79
    %v125 = vunpack.c.l.b16 %v80
    %v126 = vpack.c.b16 %v111, %v110
    %v127 = vpack.c.b16 %v113, %v112
    %v128 = vpack.c.b16 %v115, %v114
    %v129 = vpack.c.b16 %v117, %v116
    %v130 = vpack.c.b16 %v119, %v118
    %v131 = vpack.c.b16 %v121, %v120
    %v132 = vpack.c.b16 %v123, %v122
    %v133 = vpack.c.b16 %v125, %v124
    %142 = vmatprep.subr.bf16.mxu0 0
    %143 = vmatpush1.bf16.msra.mxu0 %v133
    %144 = vmatprep.subr.bf16.mxu0 0
    %145 = vmatpush1.bf16.msra.mxu0 %v132
    %146 = vmatprep.subr.bf16.mxu0 0
    %147 = vmatpush1.bf16.msra.mxu0 %v131
    %148 = vmatprep.subr.bf16.mxu0 0
    %149 = vmatpush1.bf16.msra.mxu0 %v130
    %150 = vmatprep.subr.bf16.mxu0 0
    %151 = vmatpush1.bf16.msra.mxu0 %v129
    %152 = vmatprep.subr.bf16.mxu0 0
    %153 = vmatpush1.bf16.msra.mxu0 %v128
    %154 = vmatprep.subr.bf16.mxu0 0
    %155 = vmatpush1.bf16.msra.mxu0 %v127
    %156 = vmatprep.subr.bf16.mxu0 0
    %157 = vmatpush1.bf16.msra.mxu0 %v126
    %158 = vmatprep.subr.bf16.mxu0 0
    %159 = vmatpush2.bf16.msra.mxu0 0
    %160 = vmatprep.subr.bf16.mxu0 0
    %161 = vmatpush2.bf16.msra.mxu0 0
    %162 = vmatprep.subr.bf16.mxu0 0
    %163 = vmatpush2.bf16.msra.mxu0 0
    %164 = vmatprep.subr.bf16.mxu0 0
    %165 = vmatpush2.bf16.msra.mxu0 0
    %166 = vmatprep.subr.bf16.mxu0 0
    %167 = vmatpush2.bf16.msra.mxu0 0
    %168 = vmatprep.subr.bf16.mxu0 0
    %169 = vmatpush2.bf16.msra.mxu0 0
    %170 = vmatprep.subr.bf16.mxu0 0
    %171 = vmatpush2.bf16.msra.mxu0 0
    %172 = vmatprep.subr.bf16.mxu0 0
    %173 = vmatpush2.bf16.msra.mxu0 0
    %174 = vmatprep.mubr.bf16.mxu0 0
    %175 = vmatmul.mubr.bf16.gmra.mxu0 %v92
    %v176 = vpop.f32.mrf.mxu0
    %v177 = vadd.f32 %v86, %v176
    %v178 = vpop.f32.mrf.mxu0
    %v179 = vpop.f32.mrf.mxu0
    %v180 = vadd.f32 %v86, %v179
    %v181 = vpop.f32.mrf.mxu0
    %182 = vdwg.mxu0
    %v183 = vmax.f32 %v177, 0.0
    %v184 = vmax.f32 %v180, 0.0
    %v185 = vpack.c.bf16 %v184, %v183
    %s186 = scalar_lea.vmem [#allocation5], 64
    %v187 = vld [vmem:[%s186] sm:$0xf]
    %v188 = vld [vmem:[%s186 + $0x4] sm:$0xf]
    %v189 = vld [vmem:[%s186 + $0x8] sm:$0xf]
    %v190 = vld [vmem:[%s186 + $0xc] sm:$0xf]
    %v191 = vld [vmem:[%s186 + $0x10] sm:$0xf]
    %v192 = vld [vmem:[%s186 + $0x14] sm:$0xf]
    %v193 = vld [vmem:[%s186 + $0x18] sm:$0xf]
    %v194 = vld [vmem:[%s186 + $0x1c] sm:$0xf]
    %v195 = vld [vmem:[%s186 + $0x20] sm:$0xf]
    %v196 = vld [vmem:[%s186 + $0x24] sm:$0xf]
    %v197 = vld [vmem:[%s186 + $0x28] sm:$0xf]
    %v198 = vld [vmem:[%s186 + $0x2c] sm:$0xf]
    %v199 = vld [vmem:[%s186 + $0x30] sm:$0xf]
    %v200 = vld [vmem:[%s186 + $0x34] sm:$0xf]
    %v201 = vld [vmem:[%s186 + $0x38] sm:$0xf]
    %v202 = vld [vmem:[%s186 + $0x3c] sm:$0xf]
    %s203 = scalar_lea.vmem %s2, 1
    %v204 = vld [vmem:[%s203] sm:$0x1]
    %v206 = vlaneseq
    %v207 = vshrl.u32 %v206, 7
    %v208 = vsub.s32 0, %v207
    %v209 = vrot.slane %v204, %v208
    %v227 = vunpack.c.l.b16 %v187
    %v228 = vunpack.c.l.b16 %v188
    %v229 = vunpack.c.l.b16 %v189
    %v230 = vunpack.c.l.b16 %v190
    %v231 = vunpack.c.l.b16 %v191
    %v232 = vunpack.c.l.b16 %v192
    %v233 = vunpack.c.l.b16 %v193
    %v234 = vunpack.c.l.b16 %v194
    %v235 = vunpack.c.l.b16 %v195
    %v236 = vunpack.c.l.b16 %v196
    %v237 = vunpack.c.l.b16 %v197
    %v238 = vunpack.c.l.b16 %v198
    %v239 = vunpack.c.l.b16 %v199
    %v240 = vunpack.c.l.b16 %v200
    %v241 = vunpack.c.l.b16 %v201
    %v242 = vunpack.c.l.b16 %v202
    %v243 = vpack.c.b16 %v228, %v227
    %v244 = vpack.c.b16 %v230, %v229
    %v245 = vpack.c.b16 %v232, %v231
    %v246 = vpack.c.b16 %v234, %v233
    %v247 = vpack.c.b16 %v236, %v235
    %v248 = vpack.c.b16 %v238, %v237
    %v249 = vpack.c.b16 %v240, %v239
    %v250 = vpack.c.b16 %v242, %v241
    %259 = vmatprep.subr.bf16.mxu0 0
    %260 = vmatpush1.bf16.msra.mxu0 %v250
    %261 = vmatprep.subr.bf16.mxu0 0
    %262 = vmatpush1.bf16.msra.mxu0 %v249
    %263 = vmatprep.subr.bf16.mxu0 0
    %264 = vmatpush1.bf16.msra.mxu0 %v248
    %265 = vmatprep.subr.bf16.mxu0 0
    %266 = vmatpush1.bf16.msra.mxu0 %v247
    %267 = vmatprep.subr.bf16.mxu0 0
    %268 = vmatpush1.bf16.msra.mxu0 %v246
    %269 = vmatprep.subr.bf16.mxu0 0
    %270 = vmatpush1.bf16.msra.mxu0 %v245
    %271 = vmatprep.subr.bf16.mxu0 0
    %272 = vmatpush1.bf16.msra.mxu0 %v244
    %273 = vmatprep.subr.bf16.mxu0 0
    %274 = vmatpush1.bf16.msra.mxu0 %v243
    %275 = vmatprep.subr.bf16.mxu0 0
    %276 = vmatpush2.bf16.msra.mxu0 0
    %277 = vmatprep.subr.bf16.mxu0 0
    %278 = vmatpush2.bf16.msra.mxu0 0
    %279 = vmatprep.subr.bf16.mxu0 0
    %280 = vmatpush2.bf16.msra.mxu0 0
    %281 = vmatprep.subr.bf16.mxu0 0
    %282 = vmatpush2.bf16.msra.mxu0 0
    %283 = vmatprep.subr.bf16.mxu0 0
    %284 = vmatpush2.bf16.msra.mxu0 0
    %285 = vmatprep.subr.bf16.mxu0 0
    %286 = vmatpush2.bf16.msra.mxu0 0
    %287 = vmatprep.subr.bf16.mxu0 0
    %288 = vmatpush2.bf16.msra.mxu0 0
    %289 = vmatprep.subr.bf16.mxu0 0
    %290 = vmatpush2.bf16.msra.mxu0 0
    %291 = vmatprep.mubr.bf16.mxu0 0
    %292 = vmatmul.mubr.bf16.gmra.mxu0 %v185
    %v293 = vpop.f32.mrf.mxu0
    %v294 = vadd.f32 %v209, %v293
    %v295 = vpop.f32.mrf.mxu0
    %v296 = vpop.f32.mrf.mxu0
    %v297 = vadd.f32 %v209, %v296
    %v298 = vpop.f32.mrf.mxu0
    %299 = vdwg.mxu0
    %v300 = vmax.f32 %v294, 0.0
    %v301 = vmax.f32 %v297, 0.0
    %v302 = vpack.c.bf16 %v301, %v300
    %v303 = vld [vmem:[#allocation7] sm:$0xf]
    %v304 = vld [vmem:[#allocation7 + $0x4] sm:$0xf]
    %v305 = vld [vmem:[#allocation7 + $0x8] sm:$0xf]
    %v306 = vld [vmem:[#allocation7 + $0xc] sm:$0xf]
    %v307 = vld [vmem:[#allocation7 + $0x10] sm:$0xf]
    %v308 = vld [vmem:[#allocation7 + $0x14] sm:$0xf]
    %v309 = vld [vmem:[#allocation7 + $0x18] sm:$0xf]
    %v310 = vld [vmem:[#allocation7 + $0x1c] sm:$0xf]
    %v311 = vld [vmem:[#allocation7 + $0x20] sm:$0xf]
    %v312 = vld [vmem:[#allocation7 + $0x24] sm:$0xf]
    %v313 = vld [vmem:[#allocation7 + $0x28] sm:$0xf]
    %v314 = vld [vmem:[#allocation7 + $0x2c] sm:$0xf]
    %v315 = vld [vmem:[#allocation7 + $0x30] sm:$0xf]
    %v316 = vld [vmem:[#allocation7 + $0x34] sm:$0xf]
    %v317 = vld [vmem:[#allocation7 + $0x38] sm:$0xf]
    %v318 = vld [vmem:[#allocation7 + $0x3c] sm:$0xf]
    %v319 = vld [vmem:[%s4] sm:$0x1]
    %v321 = vlaneseq
    %v322 = vshrl.u32 %v321, 7
    %v323 = vsub.s32 0, %v322
    %v324 = vrot.slane %v319, %v323
    %v342 = vunpack.c.l.b16 %v303
    %v343 = vunpack.c.l.b16 %v304
    %v344 = vunpack.c.l.b16 %v305
    %v345 = vunpack.c.l.b16 %v306
    %v346 = vunpack.c.l.b16 %v307
    %v347 = vunpack.c.l.b16 %v308
    %v348 = vunpack.c.l.b16 %v309
    %v349 = vunpack.c.l.b16 %v310
    %v350 = vunpack.c.l.b16 %v311
    %v351 = vunpack.c.l.b16 %v312
    %v352 = vunpack.c.l.b16 %v313
    %v353 = vunpack.c.l.b16 %v314
    %v354 = vunpack.c.l.b16 %v315
    %v355 = vunpack.c.l.b16 %v316
    %v356 = vunpack.c.l.b16 %v317
    %v357 = vunpack.c.l.b16 %v318
    %v358 = vpack.c.b16 %v343, %v342
    %v359 = vpack.c.b16 %v345, %v344
    %v360 = vpack.c.b16 %v347, %v346
    %v361 = vpack.c.b16 %v349, %v348
    %v362 = vpack.c.b16 %v351, %v350
    %v363 = vpack.c.b16 %v353, %v352
    %v364 = vpack.c.b16 %v355, %v354
    %v365 = vpack.c.b16 %v357, %v356
    %374 = vmatprep.subr.bf16.mxu0 0
    %375 = vmatpush1.bf16.msra.mxu0 %v365
    %376 = vmatprep.subr.bf16.mxu0 0
    %377 = vmatpush1.bf16.msra.mxu0 %v364
    %378 = vmatprep.subr.bf16.mxu0 0
    %379 = vmatpush1.bf16.msra.mxu0 %v363
    %380 = vmatprep.subr.bf16.mxu0 0
    %381 = vmatpush1.bf16.msra.mxu0 %v362
    %382 = vmatprep.subr.bf16.mxu0 0
    %383 = vmatpush1.bf16.msra.mxu0 %v361
    %384 = vmatprep.subr.bf16.mxu0 0
    %385 = vmatpush1.bf16.msra.mxu0 %v360
    %386 = vmatprep.subr.bf16.mxu0 0
    %387 = vmatpush1.bf16.msra.mxu0 %v359
    %388 = vmatprep.subr.bf16.mxu0 0
    %389 = vmatpush1.bf16.msra.mxu0 %v358
    %390 = vmatprep.subr.bf16.mxu0 0
    %391 = vmatpush2.bf16.msra.mxu0 0
    %392 = vmatprep.subr.bf16.mxu0 0
    %393 = vmatpush2.bf16.msra.mxu0 0
    %394 = vmatprep.subr.bf16.mxu0 0
    %395 = vmatpush2.bf16.msra.mxu0 0
    %396 = vmatprep.subr.bf16.mxu0 0
    %397 = vmatpush2.bf16.msra.mxu0 0
    %398 = vmatprep.subr.bf16.mxu0 0
    %399 = vmatpush2.bf16.msra.mxu0 0
    %400 = vmatprep.subr.bf16.mxu0 0
    %401 = vmatpush2.bf16.msra.mxu0 0
    %402 = vmatprep.subr.bf16.mxu0 0
    %403 = vmatpush2.bf16.msra.mxu0 0
    %404 = vmatprep.subr.bf16.mxu0 0
    %405 = vmatpush2.bf16.msra.mxu0 0
    %406 = vmatprep.mubr.bf16.mxu0 0
    %407 = vmatmul.mubr.bf16.gmra.mxu0 %v302
    %v408 = vpop.f32.mrf.mxu0
    %v409 = vadd.f32 %v324, %v408
    %v410 = vpop.f32.mrf.mxu0
    %v411 = vpop.f32.mrf.mxu0
    %v412 = vadd.f32 %v324, %v411
    %v413 = vpop.f32.mrf.mxu0
    %414 = vdwg.mxu0
    %415 = vst [vmem:[#allocation8] sm:$0xff] %v409
    %416 = vst [vmem:[#allocation8 + $0x8] sm:$0xff] %v412
    // Predicated region
    $region34: #{tpu_custom_call.1} parent=1 // pred_check
      _
    $region35: #{tpu_custom_call.1} parent=1 // pred_check_branch
      %418 = sbr.rel (0) target = $region37
    $region36: #{tpu_custom_call.1} parent=1 // pred_region
      %s420 = ssub.s32 256, 256
      %421 = vsyncadd [#allocation4], %s420
      %s422 = sshll.u32 [#allocation8], 4
      %s423 = int_to_ptr.vmem [resolvable:$true] %s422
      %428 = dma.vmem_to_hbm [thread:$0]  %s423, 256, %s5, [#allocation4], 128, 128, 8
    $region37: #{tpu_custom_call.1} parent=1 // pred_fallthru
      _
    // Predicated region
    $region38: #{tpu_custom_call.1} parent=1 // pred_check
      _
    $region39: #{tpu_custom_call.1} parent=1 // pred_check_branch
      %430 = sbr.rel (0) target = $region41
    $region40: #{tpu_custom_call.1} parent=1 // pred_region
      %431 = dma.done [#allocation4], 256
    $region41: #{tpu_custom_call.1} parent=1 // pred_fallthru
      _
    %432 = vsyncpa [#allocation3], 1
    %433 = vsyncpa [#allocation6], 1
    %434 = vsyncpa [#allocation4], 1

</llo_original>
